<compile_context>
chip_gen: v7x
topology: tpu7x:2x2x1
jax: 0.10.0
libtpu: 0.0.40
codegen_flags: <defaults>
</compile_context>

<pallas_src>
import jax
import jax.numpy as jnp
from jax.experimental import pallas as pl
from jax.experimental.pallas import tpu as pltpu


def _round_up(x, m):
    return ((x + m - 1) // m) * m


def logbilinear_kernel(g_ref, w1_ref, w2_ref, b1_ref, b2_ref, out_ref):
    # x[j, b] = sum_i G[j, i] * w1[i, b]     (MXU: bf16 inputs, f32 accumulate)
    x = jnp.dot(g_ref[...], w1_ref[...], preferred_element_type=jnp.float32)
    # s[b]    = sum_j x[j, b] * w2[j, b]     (VPU multiply + sublane reduce)
    s = jnp.sum(x * w2_ref[...].astype(jnp.float32), axis=0, keepdims=True)
    # Lane-dense (1, TB) store of scores + per-word biases.
    out_ref[...] = s + b1_ref[...] + b2_ref[...]


def precompute_gram(wt, compute_dtype=jnp.bfloat16):
    """G = Wt @ Wt.T for the linear transform weight Wt (Din, Dout).

    Depends only on the transform parameters -> compute once per cooccur_type
    and reuse across forward calls.
    """
    g = jnp.dot(wt, wt.T, preferred_element_type=jnp.float32)
    return g.astype(compute_dtype)


def logbilinear_forward(w1t, w2t, g, b1, b2, *, block_b=512):
    """LogBilinear scores.

    w1t, w2t: (Din, B) feature-major gathered embeddings for ids1 / ids2.
    g:        (Din, Din) Gram matrix of the linear transform (see precompute_gram).
    b1, b2:   (B,) per-word biases for the selected cooccur type.
    Returns   (B,) float32 scores.
    """
    din, bsz = w1t.shape
    compute_dtype = g.dtype

    # Batch tile: multiple of 128 (lane-dense), default 512 rows; padded batch.
    tb = min(_round_up(block_b, 128), _round_up(bsz, 128))
    b_pad = _round_up(bsz, tb)
    pad = b_pad - bsz

    w1p = jnp.pad(w1t, ((0, 0), (0, pad))).astype(compute_dtype)
    w2p = jnp.pad(w2t, ((0, 0), (0, pad))).astype(compute_dtype)
    b1p = jnp.pad(b1.astype(jnp.float32), (0, pad)).reshape(1, b_pad)
    b2p = jnp.pad(b2.astype(jnp.float32), (0, pad)).reshape(1, b_pad)

    grid = (b_pad // tb,)
    out = pl.pallas_call(
        logbilinear_kernel,
        out_shape=jax.ShapeDtypeStruct((1, b_pad), jnp.float32),
        grid=grid,
        in_specs=[
            pl.BlockSpec((din, din), lambda i: (0, 0)),   # G: resident across tiles
            pl.BlockSpec((din, tb), lambda i: (0, i)),    # w1 tile (batch on lanes)
            pl.BlockSpec((din, tb), lambda i: (0, i)),    # w2 tile
            pl.BlockSpec((1, tb), lambda i: (0, i)),      # bias1 (lane-dense)
            pl.BlockSpec((1, tb), lambda i: (0, i)),      # bias2 (lane-dense)
        ],
        out_specs=pl.BlockSpec((1, tb), lambda i: (0, i)),  # lane-dense scores
        compiler_params=pltpu.CompilerParams(
            # batch tiles are independent -> shard across TCs on v7x; no-op on v5e/v6e
            dimension_semantics=("parallel",),
            # explicit, generation-safe VMEM budget (usage here is << this)
            vmem_limit_bytes=32 * 1024 * 1024,
        ),
    )(g, w1p, w2p, b1p, b2p)
    return out[0, :bsz]


if __name__ == "__main__":
    # Small, deterministic synthetic config (no checkpoint loading).
    num_words = 32          # const.num_words
    embed_dims = 32         # const.embed_dims  (== xform in_feat)
    out_feat = 64           # xform out_feat    (xform_type='linear')
    num_cooccur_types = 4   # columns of the per-word bias table
    batch = 8

    key = jax.random.PRNGKey(0)
    k_w, k_b, k_xf, k_i1, k_i2 = jax.random.split(key, 5)

    # Embedding table stored feature-major (Din, num_words): the gathered
    # operand is already in the (Din, B) layout the kernel wants (no transpose).
    W_emb_t = jax.random.normal(k_w, (embed_dims, num_words), dtype=jnp.float32) * 0.1
    B_emb = jax.random.normal(k_b, (num_words, num_cooccur_types), dtype=jnp.float32) * 0.1
    # nn.Linear(in_feat, out_feat, bias=False) weight, stored pre-transposed.
    W_xform_t = jax.random.normal(k_xf, (embed_dims, out_feat), dtype=jnp.float32) * 0.1

    ids1 = jax.random.randint(k_i1, (batch,), 0, num_words)
    ids2 = jax.random.randint(k_i2, (batch,), 0, num_words)
    cooccur_idx = 1   # const.cooccur_type_to_idx[cooccur_type]

    # Embedding lookup (gather) is glue in plain JAX.
    w1t = W_emb_t[:, ids1]                      # (Din, B)
    w2t = W_emb_t[:, ids2]                      # (Din, B)
    b1i = B_emb[ids1, cooccur_idx]              # (B,)
    b2i = B_emb[ids2, cooccur_idx]              # (B,)

    # Amortized: depends only on the transform weights (one per cooccur_type).
    g = precompute_gram(W_xform_t)              # (Din, Din) bf16

    scores = logbilinear_forward(w1t, w2t, g, b1i, b2i)
    jax.block_until_ready(scores)

    # Reference 1: exact f32 module semantics (two matmuls, rowwise dot, bias).
    w1 = w1t.T
    w2 = w2t.T
    x1 = w1 @ W_xform_t
    x2 = w2 @ W_xform_t
    ref_exact = jnp.sum(x1 * x2, axis=1) + b1i + b2i
    # Reference 2: same bf16 quantization of streamed operands, f32 math.
    gq = g.astype(jnp.float32)
    w1q = w1.astype(jnp.bfloat16).astype(jnp.float32)
    w2q = w2.astype(jnp.bfloat16).astype(jnp.float32)
    ref_q = jnp.sum((w1q @ gq) * w2q, axis=1) + b1i + b2i

    assert scores.shape == (batch,)
    assert jnp.allclose(scores, ref_q, atol=1e-3, rtol=1e-3), (scores, ref_q)
    assert jnp.allclose(scores, ref_exact, atol=2e-2, rtol=5e-2), (scores, ref_exact)

    print("KERNEL_OK")
</pallas_src>

<mosaic_0001>
module attributes {stable_mosaic.version = 11 : i64} {
  func.func @logbilinear_kernel(%arg0: i32, %arg1: memref<32x32xbf16, #tpu.memory_space<vmem>>, %arg2: memref<32x128xbf16, #tpu.memory_space<vmem>>, %arg3: memref<32x128xbf16, #tpu.memory_space<vmem>>, %arg4: memref<1x128xf32, #tpu.memory_space<vmem>>, %arg5: memref<1x128xf32, #tpu.memory_space<vmem>>, %arg6: memref<1x128xf32, #tpu.memory_space<vmem>>) attributes {dimension_semantics = [#tpu.dimension_semantics<parallel>], iteration_bounds = array<i64: 1>, scalar_prefetch = 0 : i64, scratch_operands = 0 : i64, tpu.core_type = #tpu.core_type<tc>, window_params = [{pipeline_mode = #tpu.pipeline_mode<synchronous>, transform_indices = @transform_0, window_bounds = array<i64: 32, 32>}, {transform_indices = @transform_1, window_bounds = array<i64: 32, 128>}, {transform_indices = @transform_2, window_bounds = array<i64: 32, 128>}, {transform_indices = @transform_3, window_bounds = array<i64: 1, 128>}, {transform_indices = @transform_4, window_bounds = array<i64: 1, 128>}, {transform_indices = @transform_5, window_bounds = array<i64: 1, 128>}]} {
    %c0 = arith.constant 0 : index
    %c0_0 = arith.constant 0 : index
    %0 = vector.load %arg1[%c0, %c0_0] : memref<32x32xbf16, #tpu.memory_space<vmem>>, vector<32x32xbf16>
    %c0_1 = arith.constant 0 : index
    %c0_2 = arith.constant 0 : index
    %1 = vector.load %arg2[%c0_1, %c0_2] : memref<32x128xbf16, #tpu.memory_space<vmem>>, vector<32x128xbf16>
    %cst = arith.constant dense<0.000000e+00> : vector<32x128xf32>
    %2 = tpu.matmul %0, %1, %cst {dimension_numbers = #tpu.dot_dimension_numbers<[1], [0], [0], [1], [0, 0, 1, 1], [], []>} : vector<32x32xbf16>, vector<32x128xbf16>, vector<32x128xf32> -> vector<32x128xf32>
    %c0_3 = arith.constant 0 : index
    %c0_4 = arith.constant 0 : index
    %3 = vector.load %arg3[%c0_3, %c0_4] : memref<32x128xbf16, #tpu.memory_space<vmem>>, vector<32x128xbf16>
    %4 = arith.extf %3 : vector<32x128xbf16> to vector<32x128xf32>
    %5 = arith.mulf %2, %4 : vector<32x128xf32>
    %cst_5 = arith.constant dense<0.000000e+00> : vector<128xf32>
    %6 = vector.multi_reduction <add>, %5, %cst_5 [0] : vector<32x128xf32> to vector<128xf32>
    %7 = vector.shape_cast %6 : vector<128xf32> to vector<1x128xf32>
    %c0_6 = arith.constant 0 : index
    %c0_7 = arith.constant 0 : index
    %8 = vector.load %arg4[%c0_6, %c0_7] : memref<1x128xf32, #tpu.memory_space<vmem>>, vector<1x128xf32>
    %9 = arith.addf %7, %8 : vector<1x128xf32>
    %c0_8 = arith.constant 0 : index
    %c0_9 = arith.constant 0 : index
    %10 = vector.load %arg5[%c0_8, %c0_9] : memref<1x128xf32, #tpu.memory_space<vmem>>, vector<1x128xf32>
    %11 = arith.addf %9, %10 : vector<1x128xf32>
    %c0_10 = arith.constant 0 : index
    %c0_11 = arith.constant 0 : index
    %12 = vector.load %arg6[%c0_10, %c0_11] : memref<1x128xf32, #tpu.memory_space<vmem>>, vector<1x128xf32>
    tpu.vector_store %arg6[%c0_10, %c0_11], %11 {strides = array<i32>} : memref<1x128xf32, #tpu.memory_space<vmem>>, vector<1x128xf32>,
    return
  }
  func.func @transform_0(%arg0: i32) -> (i32, i32) {
    %c0_i32 = arith.constant 0 : i32
    %c0_i32_0 = arith.constant 0 : i32
    %c0_i32_1 = arith.constant 0 : i32
    return %c0_i32, %c0_i32_0 : i32, i32
  }
  func.func @transform_1(%arg0: i32) -> (i32, i32) {
    %c0_i32 = arith.constant 0 : i32
    %c0_i32_0 = arith.constant 0 : i32
    return %c0_i32, %arg0 : i32, i32
  }
  func.func @transform_2(%arg0: i32) -> (i32, i32) {
    %c0_i32 = arith.constant 0 : i32
    %c0_i32_0 = arith.constant 0 : i32
    return %c0_i32, %arg0 : i32, i32
  }
  func.func @transform_3(%arg0: i32) -> (i32, i32) {
    %c0_i32 = arith.constant 0 : i32
    %c0_i32_0 = arith.constant 0 : i32
    return %c0_i32, %arg0 : i32, i32
  }
  func.func @transform_4(%arg0: i32) -> (i32, i32) {
    %c0_i32 = arith.constant 0 : i32
    %c0_i32_0 = arith.constant 0 : i32
    return %c0_i32, %arg0 : i32, i32
  }
  func.func @transform_5(%arg0: i32) -> (i32, i32) {
    %c0_i32 = arith.constant 0 : i32
    %c0_i32_0 = arith.constant 0 : i32
    return %c0_i32, %arg0 : i32, i32
  }
}

</mosaic_0001>

<llo_original>
// kernel: tpu_custom_call.1
$region0: #{tpu_custom_call.1}
  #allocation0 [shape = 'u32[]', space=smem, size = 0x4, offset = 0x4, fixed_abs, tag = 'smem constant byte address 0x4 - core index']
  #allocation1 [shape = 'u32[144,128]{1,0:T(1,128)}', space=vmem, size = 0x12000, scoped, tag = 'internal scratch']
  %s0 = inlined_call_operand.hbm [shape: bf16[32,32], index: 0, kind: input, shape index: {}]
  %s1 = inlined_call_operand.hbm [shape: bf16[32,128], index: 1, kind: input, shape index: {}]
  %s2 = inlined_call_operand.hbm [shape: bf16[32,128], index: 2, kind: input, shape index: {}]
  %s3 = inlined_call_operand.vmem [shape: f32[1,128], index: 3, kind: input, shape index: {}]
  %s4 = inlined_call_operand.vmem [shape: f32[1,128], index: 4, kind: input, shape index: {}]
  %s5 = inlined_call_operand.hbm [shape: f32[1,128], index: 5, kind: output, shape index: {}]
  %s6 = sld [smem:[#allocation0]]
  $region42: #{tpu_custom_call.1} parent=0
    _
  %s8 = ssub.s32 1, %s6
  %s9 = scalar_select 0, %s8, %s6
  $region1: #{tpu_custom_call.1} parent=0
    #allocation2 [shape = 'u8[8192]{0}', space=vmem, size = 0x2000, scoped, tag = 'input window, operand 0, single buffered']
    #allocation3 [shape = 's32[1]{0}', space=sflag, size = 0x4, scoped, tag = 'scoped memory for tpu_custom_call.1']
    #allocation4 [shape = 's32[1]{0}', space=sflag, size = 0x4, scoped, tag = 'scoped memory for tpu_custom_call.1']
    #allocation5 [shape = 'u8[8192]{0}', space=vmem, size = 0x2000, scoped, tag = 'input window, operand 1, single buffered']
    #allocation6 [shape = 's32[1]{0}', space=sflag, size = 0x4, scoped, tag = 'scoped memory for tpu_custom_call.1']
    #allocation7 [shape = 'u8[8192]{0}', space=vmem, size = 0x2000, scoped, tag = 'input window, operand 2, single buffered']
    #allocation8 [shape = 'u8[512]{0}', space=vmem, size = 0x400, scoped, tag = 'output window, operand 0, single buffered']
    %10 = vsyncpa [#allocation3], 0
    %11 = vsyncpa [#allocation6], 0
    %12 = vsyncpa [#allocation4], 0
    // Predicated region
    $region2: #{tpu_custom_call.1} parent=1 // pred_check
      _
    $region3: #{tpu_custom_call.1} parent=1 // pred_check_branch
      %14 = sbr.rel (0) target = $region5
    $region4: #{tpu_custom_call.1} parent=1 // pred_region
      %s16 = ssub.s32 256, 256
      %17 = vsyncadd [#allocation3], %s16
      %s18 = sshll.u32 [#allocation2], 4
      %s19 = int_to_ptr.vmem [resolvable:$true] %s18
      %24 = dma.hbm_to_vmem [thread:$0]  %s0, 256, %s19, [#allocation3], 64, 64, 4
    $region5: #{tpu_custom_call.1} parent=1 // pred_fallthru
      _
    // Predicated region
    $region6: #{tpu_custom_call.1} parent=1 // pred_check
      _
    $region7: #{tpu_custom_call.1} parent=1 // pred_check_branch
      %26 = sbr.rel (0) target = $region9
    $region8: #{tpu_custom_call.1} parent=1 // pred_region
      %s28 = ssub.s32 256, 256
      %29 = vsyncadd [#allocation6], %s28
      %s30 = sshll.u32 [#allocation5], 4
      %s31 = int_to_ptr.vmem [resolvable:$true] %s30
      %36 = dma.hbm_to_vmem [thread:$0]  %s1, 256, %s31, [#allocation6], 64, 64, 4
    $region9: #{tpu_custom_call.1} parent=1 // pred_fallthru
      _
    // Predicated region
    $region10: #{tpu_custom_call.1} parent=1 // pred_check
      _
    $region11: #{tpu_custom_call.1} parent=1 // pred_check_branch
      %38 = sbr.rel (0) target = $region13
    $region12: #{tpu_custom_call.1} parent=1 // pred_region
      %s40 = ssub.s32 256, 256
      %41 = vsyncadd [#allocation6], %s40
      %s42 = sshll.u32 [#allocation7], 4
      %s43 = int_to_ptr.vmem [resolvable:$true] %s42
      %48 = dma.hbm_to_vmem [thread:$0]  %s2, 256, %s43, [#allocation6], 64, 64, 4
    $region13: #{tpu_custom_call.1} parent=1 // pred_fallthru
      _
    // Predicated region
    $region14: #{tpu_custom_call.1} parent=1 // pred_check
      _
    $region15: #{tpu_custom_call.1} parent=1 // pred_check_branch
      %50 = sbr.rel (0) target = $region17
    $region16: #{tpu_custom_call.1} parent=1 // pred_region
      _
    $region17: #{tpu_custom_call.1} parent=1 // pred_fallthru
      _
    // Predicated region
    $region18: #{tpu_custom_call.1} parent=1 // pred_check
      _
    $region19: #{tpu_custom_call.1} parent=1 // pred_check_branch
      %52 = sbr.rel (0) target = $region21
    $region20: #{tpu_custom_call.1} parent=1 // pred_region
      _
    $region21: #{tpu_custom_call.1} parent=1 // pred_fallthru
      _
    // Predicated region
    $region22: #{tpu_custom_call.1} parent=1 // pred_check
      _
    $region23: #{tpu_custom_call.1} parent=1 // pred_check_branch
      %54 = sbr.rel (0) target = $region25
    $region24: #{tpu_custom_call.1} parent=1 // pred_region
      %55 = dma.done [#allocation3], 256
    $region25: #{tpu_custom_call.1} parent=1 // pred_fallthru
      _
    // Predicated region
    $region26: #{tpu_custom_call.1} parent=1 // pred_check
      _
    $region27: #{tpu_custom_call.1} parent=1 // pred_check_branch
      %57 = sbr.rel (0) target = $region29
    $region28: #{tpu_custom_call.1} parent=1 // pred_region
      %58 = dma.done [#allocation6], 256
    $region29: #{tpu_custom_call.1} parent=1 // pred_fallthru
      _
    // Predicated region
    $region30: #{tpu_custom_call.1} parent=1 // pred_check
      _
    $region31: #{tpu_custom_call.1} parent=1 // pred_check_branch
      %60 = sbr.rel (0) target = $region33
    $region32: #{tpu_custom_call.1} parent=1 // pred_region
      %61 = dma.done [#allocation6], 256
    $region33: #{tpu_custom_call.1} parent=1 // pred_fallthru
      _
    %v63 = vld [vmem:[#allocation2] sm:$0xf]
    %v64 = vld [vmem:[#allocation2 + $0x4] sm:$0xf]
    %v65 = vld [vmem:[#allocation2 + $0x8] sm:$0xf]
    %v66 = vld [vmem:[#allocation2 + $0xc] sm:$0xf]
    %v67 = vld [vmem:[#allocation5] sm:$0xf]
    %v68 = vld [vmem:[#allocation5 + $0x4] sm:$0xf]
    %v69 = vld [vmem:[#allocation5 + $0x8] sm:$0xf]
    %v70 = vld [vmem:[#allocation5 + $0xc] sm:$0xf]
    %v75 = vunpack.c.l.b16 %v63
    %v76 = vunpack.c.l.b16 %v64
    %v77 = vunpack.c.l.b16 %v65
    %v78 = vunpack.c.l.b16 %v66
    %v79 = vpack.c.b16 %v76, %v75
    %v80 = vpack.c.b16 %v78, %v77
    %v85 = vunpack.c.l.b16 %v67
    %v86 = vunpack.c.l.b16 %v68
    %v87 = vunpack.c.l.b16 %v69
    %v88 = vunpack.c.l.b16 %v70
    %v89 = vpack.c.b16 %v86, %v85
    %v90 = vpack.c.b16 %v88, %v87
    %vm93 = vcmask 261120
    %v95 = vsel %vm93, %v79, 0
    %v98 = vsel %vm93, %v80, 0
    %100 = vmatprep.subr.bf16.mxu0 0
    %101 = vmatpush1.bf16.msra.mxu0 %v89
    %102 = vmatprep.subr.bf16.mxu0 0
    %103 = vmatpush1.bf16.msra.mxu0 %v90
    %104 = vmatprep.subr.bf16.mxu0 0
    %105 = vmatpush1.bf16.msra.mxu0 0
    %106 = vmatprep.subr.bf16.mxu0 0
    %107 = vmatpush1.bf16.msra.mxu0 0
    %108 = vmatprep.subr.bf16.mxu0 0
    %109 = vmatpush1.bf16.msra.mxu0 0
    %110 = vmatprep.subr.bf16.mxu0 0
    %111 = vmatpush1.bf16.msra.mxu0 0
    %112 = vmatprep.subr.bf16.mxu0 0
    %113 = vmatpush1.bf16.msra.mxu0 0
    %114 = vmatprep.subr.bf16.mxu0 0
    %115 = vmatpush1.bf16.msra.mxu0 0
    %116 = vmatprep.subr.bf16.mxu0 0
    %117 = vmatpush1.bf16.msra.mxu0 0
    %118 = vmatprep.subr.bf16.mxu0 0
    %119 = vmatpush1.bf16.msra.mxu0 0
    %120 = vmatprep.subr.bf16.mxu0 0
    %121 = vmatpush1.bf16.msra.mxu0 0
    %122 = vmatprep.subr.bf16.mxu0 0
    %123 = vmatpush1.bf16.msra.mxu0 0
    %124 = vmatprep.subr.bf16.mxu0 0
    %125 = vmatpush1.bf16.msra.mxu0 0
    %126 = vmatprep.subr.bf16.mxu0 0
    %127 = vmatpush1.bf16.msra.mxu0 0
    %128 = vmatprep.subr.bf16.mxu0 0
    %129 = vmatpush1.bf16.msra.mxu0 0
    %130 = vmatprep.subr.bf16.mxu0 0
    %131 = vmatpush1.bf16.msra.mxu0 0
    %132 = vmatprep.mubr.bf16.mxu0 0
    %133 = vmatmul.mubr.bf16.gmra.mrb[0].mxu0 %v95
    %v134 = vpop.f32.mrb[0].mxu0
    %v135 = vadd.f32 0.0, %v134
    %v136 = vpop.f32.mrb[0].mxu0
    %v137 = vpop.f32.mrb[0].mxu0
    %v138 = vadd.f32 0.0, %v137
    %v139 = vpop.f32.mrb[0].mxu0
    %140 = vmatprep.mubr.bf16.mxu0 0
    %141 = vmatmul.mubr.bf16.gmra.mrb[0].mxu0 %v98
    %v142 = vpop.f32.mrb[0].mxu0
    %v143 = vadd.f32 0.0, %v142
    %v144 = vpop.f32.mrb[0].mxu0
    %v145 = vpop.f32.mrb[0].mxu0
    %v146 = vadd.f32 0.0, %v145
    %v147 = vpop.f32.mrb[0].mxu0
    %148 = vdwg.mxu0
    %v149 = vld [vmem:[#allocation7] sm:$0xf]
    %v150 = vld [vmem:[#allocation7 + $0x4] sm:$0xf]
    %v151 = vld [vmem:[#allocation7 + $0x8] sm:$0xf]
    %v152 = vld [vmem:[#allocation7 + $0xc] sm:$0xf]
    %v153 = vunpack.c.l.bf16 %v149
    %v154 = vunpack.c.l.bf16 %v150
    %v155 = vunpack.c.l.bf16 %v151
    %v156 = vunpack.c.l.bf16 %v152
    %v157 = vmul.f32 %v135, %v153
    %v158 = vmul.f32 %v138, %v154
    %v159 = vmul.f32 %v143, %v155
    %v160 = vmul.f32 %v146, %v156
    %v161 = vadd.f32 %v157, %v158
    %v162 = vadd.f32 %v161, %v159
    %v163 = vadd.f32 %v162, %v160
    %v164 = vrot.slane %v163, 4
    %v165 = vadd.f32 %v163, %v164
    %v166 = vrot.slane %v165, 2
    %v167 = vadd.f32 %v165, %v166
    %v168 = vrot.slane %v167, 1
    %v169 = vadd.f32 %v167, %v168
    %v170 = vld [vmem:[%s3] sm:$0x1]
    %v171 = vadd.f32 %v169, %v170
    %v172 = vld [vmem:[%s4] sm:$0x1]
    %v173 = vadd.f32 %v171, %v172
    %174 = vst [vmem:[#allocation8] sm:$0x1] %v173
    // Predicated region
    $region34: #{tpu_custom_call.1} parent=1 // pred_check
      _
    $region35: #{tpu_custom_call.1} parent=1 // pred_check_branch
      %176 = sbr.rel (0) target = $region37
    $region36: #{tpu_custom_call.1} parent=1 // pred_region
      %s178 = ssub.s32 16, 16
      %179 = vsyncadd [#allocation4], %s178
      %s181 = sshll.u32 [#allocation8], 4
      %s182 = int_to_ptr.vmem [resolvable:$true] %s181
      %184 = dma.vmem_to_hbm [thread:$0]  %s182, 16, %s5, [#allocation4]
    $region37: #{tpu_custom_call.1} parent=1 // pred_fallthru
      _
    // Predicated region
    $region38: #{tpu_custom_call.1} parent=1 // pred_check
      _
    $region39: #{tpu_custom_call.1} parent=1 // pred_check_branch
      %186 = sbr.rel (0) target = $region41
    $region40: #{tpu_custom_call.1} parent=1 // pred_region
      %187 = dma.done [#allocation4], 16
    $region41: #{tpu_custom_call.1} parent=1 // pred_fallthru
      _
    %188 = vsyncpa [#allocation3], 1
    %189 = vsyncpa [#allocation6], 1
    %190 = vsyncpa [#allocation4], 1

</llo_original>
